<compile_context>
chip_gen: v7x
topology: tpu7x:2x2x1
jax: 0.10.0
libtpu: 0.0.40
codegen_flags: <defaults>
</compile_context>

<pallas_src>
import functools

import jax
import jax.numpy as jnp
from jax import lax
from jax.experimental import pallas as pl
from jax.experimental.pallas import tpu as pltpu


def _round_up(x: int, m: int) -> int:
    return ((x + m - 1) // m) * m


def _pad_axis(x, axis, new_size):
    pad = new_size - x.shape[axis]
    if pad == 0:
        return x
    widths = [(0, 0)] * x.ndim
    widths[axis] = (0, pad)
    return jnp.pad(x, widths)


def _sdpa_kernel(q_ref, k_ref, v_ref, out_ref, attn_ref, logattn_ref, *,
                 inv_temperature, lk_valid):
    # Blocks: q (1, TQ, D), k (1, Lk_p, D), v (1, Lk_p, Dv_p); drop the batch dim.
    # Fold 1/temperature into q before the matmul (cheap) instead of dividing scores.
    q = q_ref[0] * jnp.asarray(inv_temperature, dtype=q_ref.dtype)   # (TQ, D)
    k = k_ref[0]                                                     # (Lk_p, D)
    v = v_ref[0]                                                     # (Lk_p, Dv_p)

    # scores = q @ k^T in "NT" form: contract last dims directly, no k transpose.
    # Native-dtype operands, f32 accumulation on the MXU.
    s = lax.dot_general(q, k, (((1,), (1,)), ((), ())),
                        preferred_element_type=jnp.float32)          # (TQ, Lk_p)

    # Mask key columns added only for lane-dense output padding (static no-op when
    # Lk is already a multiple of 128).
    if lk_valid != s.shape[-1]:
        col = lax.broadcasted_iota(jnp.int32, s.shape, 1)
        s = jnp.where(col < lk_valid, s, jnp.float32(-1e30))

    # Numerically stable softmax / log-softmax along the key axis.
    m = jnp.max(s, axis=-1, keepdims=True)
    shifted = s - m
    e = jnp.exp(shifted)
    denom = jnp.sum(e, axis=-1, keepdims=True)
    inv_denom = pl.reciprocal(denom, approx=True)   # one EUP reciprocal per row
    attn = e * inv_denom
    log_attn = shifted - jnp.log(denom)

    # output = attn @ v; cast the probabilities to v's dtype so the MXU runs at
    # full (bf16) rate when inputs are bf16.
    out = jnp.dot(attn.astype(v.dtype), v, preferred_element_type=jnp.float32)

    out_ref[0] = out.astype(out_ref.dtype)
    attn_ref[0] = attn.astype(attn_ref.dtype)
    logattn_ref[0] = log_attn.astype(logattn_ref.dtype)


def _choose_tq(lq, d, lk_p, dv_p, itemsize, budget_bytes=24 * 1024 * 1024):
    """Largest q-tile whose double-buffered blocks + f32 temporaries fit the budget."""
    lq8 = _round_up(lq, 8)
    for cand in (512, 256, 128, 64, 32, 16, 8):
        if cand > lq8:
            continue
        blocks = 2 * (cand * d            # q
                      + lk_p * d          # k
                      + lk_p * dv_p       # v
                      + cand * dv_p       # out
                      + 2 * cand * lk_p   # attn + log_attn
                      ) * itemsize
        temps = 4 * cand * lk_p * 4       # f32 intermediates (s / e / attn / log_attn)
        if blocks + temps <= budget_bytes:
            return cand
    return 8


def scaled_dot_product_attention(q, k, v, temperature):
    """Pallas TPU implementation of ScaledDotProductAttention.forward."""
    if float(temperature) == 0.0:
        raise ValueError("temperature must be non-zero")

    B, Lq, D = q.shape
    Bk, Lk, Dk = k.shape
    Bv, Lkv, Dv = v.shape
    assert B == Bk == Bv and Lk == Lkv and D == Dk, "inconsistent q/k/v shapes"

    out_dtype = q.dtype                       # match PyTorch: outputs in input dtype
    itemsize = jnp.dtype(q.dtype).itemsize

    # Lane-dense output padding: last dims of the stored slabs become multiples of 128.
    Lk_p = _round_up(Lk, 128)
    Dv_p = _round_up(Dv, 128)

    TQ = _choose_tq(Lq, D, Lk_p, Dv_p, itemsize)
    Lq_p = _round_up(Lq, TQ)

    qp = _pad_axis(q, 1, Lq_p)
    kp = _pad_axis(k, 1, Lk_p)
    vp = _pad_axis(_pad_axis(v, 1, Lk_p), 2, Dv_p)

    kernel = functools.partial(
        _sdpa_kernel,
        inv_temperature=1.0 / float(temperature),
        lk_valid=Lk,
    )

    grid = (B, Lq_p // TQ)

    out_shapes = (
        jax.ShapeDtypeStruct((B, Lq_p, Dv_p), out_dtype),
        jax.ShapeDtypeStruct((B, Lq_p, Lk_p), out_dtype),
        jax.ShapeDtypeStruct((B, Lq_p, Lk_p), out_dtype),
    )

    grid_spec = pltpu.PrefetchScalarGridSpec(
        num_scalar_prefetch=0,
        grid=grid,
        in_specs=[
            pl.BlockSpec((1, TQ, D), lambda b, t: (b, t, 0)),
            pl.BlockSpec((1, Lk_p, D), lambda b, t: (b, 0, 0)),     # reused across q tiles
            pl.BlockSpec((1, Lk_p, Dv_p), lambda b, t: (b, 0, 0)),  # reused across q tiles
        ],
        out_specs=[
            pl.BlockSpec((1, TQ, Dv_p), lambda b, t: (b, t, 0)),
            pl.BlockSpec((1, TQ, Lk_p), lambda b, t: (b, t, 0)),
            pl.BlockSpec((1, TQ, Lk_p), lambda b, t: (b, t, 0)),
        ],
    )

    cost = pl.CostEstimate(
        flops=2 * B * Lq_p * Lk_p * (D + Dv_p),
        transcendentals=2 * B * Lq_p * Lk_p,   # exp + log/reciprocal
        bytes_accessed=(qp.size + kp.size + vp.size) * itemsize
        + (B * Lq_p * Dv_p + 2 * B * Lq_p * Lk_p) * jnp.dtype(out_dtype).itemsize,
    )

    out_p, attn_p, logattn_p = pl.pallas_call(
        kernel,
        out_shape=out_shapes,
        grid_spec=grid_spec,
        compiler_params=pltpu.CompilerParams(
            dimension_semantics=("parallel", "parallel"),
            vmem_limit_bytes=64 * 1024 * 1024,
        ),
        cost_estimate=cost,
    )(qp, kp, vp)

    return (out_p[:, :Lq, :Dv],
            attn_p[:, :Lq, :Lk],
            logattn_p[:, :Lq, :Lk])


def _reference(q, k, v, temperature):
    s = jnp.einsum("bqd,bkd->bqk", q, k) / temperature
    attn = jax.nn.softmax(s, axis=2)
    log_attn = jax.nn.log_softmax(s, axis=2)
    out = jnp.einsum("bqk,bkd->bqd", attn, v)
    return out, attn, log_attn


if __name__ == "__main__":
    key = jax.random.PRNGKey(0)
    kq, kk, kv = jax.random.split(key, 3)

    # Small shapes consistent with the module (batch-first bmm attention).
    B, Lq, Lk, D, Dv = 2, 8, 8, 32, 32
    temperature = float(D) ** 0.5  # typical: sqrt(d_k)

    q = jax.random.normal(kq, (B, Lq, D), dtype=jnp.float32)
    k = jax.random.normal(kk, (B, Lk, D), dtype=jnp.float32)
    v = jax.random.normal(kv, (B, Lk, Dv), dtype=jnp.float32)

    out, attn, log_attn = scaled_dot_product_attention(q, k, v, temperature)
    jax.block_until_ready((out, attn, log_attn))

    out_r, attn_r, log_attn_r = _reference(q, k, v, temperature)
    assert out.shape == out_r.shape and attn.shape == attn_r.shape
    assert jnp.allclose(out, out_r, atol=5e-3, rtol=5e-3), "output mismatch"
    assert jnp.allclose(attn, attn_r, atol=5e-3, rtol=5e-3), "attn mismatch"
    assert jnp.allclose(log_attn, log_attn_r, atol=5e-3, rtol=5e-3), "log_attn mismatch"

    # Second small check: already lane-dense Lk/Dv (no masking) and a ragged Lq
    # (exercises q-tiling + Lq padding path).
    B2, Lq2, Lk2, D2, Dv2 = 2, 24, 128, 32, 128
    q2 = jax.random.normal(kq, (B2, Lq2, D2), dtype=jnp.float32)
    k2 = jax.random.normal(kk, (B2, Lk2, D2), dtype=jnp.float32)
    v2 = jax.random.normal(kv, (B2, Lk2, Dv2), dtype=jnp.float32)
    t2 = float(D2) ** 0.5
    out2, attn2, log_attn2 = scaled_dot_product_attention(q2, k2, v2, t2)
    jax.block_until_ready((out2, attn2, log_attn2))
    out2_r, attn2_r, log_attn2_r = _reference(q2, k2, v2, t2)
    assert jnp.allclose(out2, out2_r, atol=5e-3, rtol=5e-3), "output2 mismatch"
    assert jnp.allclose(attn2, attn2_r, atol=5e-3, rtol=5e-3), "attn2 mismatch"
    assert jnp.allclose(log_attn2, log_attn2_r, atol=5e-3, rtol=5e-3), "log_attn2 mismatch"

    print("KERNEL_OK")
</pallas_src>

<mosaic_0001>
module attributes {stable_mosaic.version = 11 : i64} {
  func.func @_sdpa_kernel(%arg0: i32, %arg1: i32, %arg2: memref<1x8x32xf32, #tpu.memory_space<vmem>>, %arg3: memref<1x128x32xf32, #tpu.memory_space<vmem>>, %arg4: memref<1x128x128xf32, #tpu.memory_space<vmem>>, %arg5: memref<1x8x128xf32, #tpu.memory_space<vmem>>, %arg6: memref<1x8x128xf32, #tpu.memory_space<vmem>>, %arg7: memref<1x8x128xf32, #tpu.memory_space<vmem>>) attributes {dimension_semantics = [#tpu.dimension_semantics<parallel>, #tpu.dimension_semantics<parallel>], iteration_bounds = array<i64: 2, 1>, scalar_prefetch = 0 : i64, scratch_operands = 0 : i64, tpu.core_type = #tpu.core_type<tc>, window_params = [{transform_indices = @transform_0, window_bounds = array<i64: 1, 8, 32>}, {transform_indices = @transform_1, window_bounds = array<i64: 1, 128, 32>}, {transform_indices = @transform_2, window_bounds = array<i64: 1, 128, 128>}, {transform_indices = @transform_3, window_bounds = array<i64: 1, 8, 128>}, {transform_indices = @transform_4, window_bounds = array<i64: 1, 8, 128>}, {transform_indices = @transform_5, window_bounds = array<i64: 1, 8, 128>}]} {
    %c0 = arith.constant 0 : index
    %c0_0 = arith.constant 0 : index
    %c0_1 = arith.constant 0 : index
    %0 = vector.load %arg2[%c0, %c0_0, %c0_1] : memref<1x8x32xf32, #tpu.memory_space<vmem>>, vector<1x8x32xf32>
    %1 = vector.shape_cast %0 : vector<1x8x32xf32> to vector<8x32xf32>
    %cst = arith.constant 0.176776692 : f32
    %2 = vector.broadcast %cst : f32 to vector<8x32xf32>
    %3 = arith.mulf %1, %2 : vector<8x32xf32>
    %c0_2 = arith.constant 0 : index
    %c0_3 = arith.constant 0 : index
    %c0_4 = arith.constant 0 : index
    %4 = vector.load %arg3[%c0_2, %c0_3, %c0_4] : memref<1x128x32xf32, #tpu.memory_space<vmem>>, vector<1x128x32xf32>
    %5 = vector.shape_cast %4 : vector<1x128x32xf32> to vector<128x32xf32>
    %c0_5 = arith.constant 0 : index
    %c0_6 = arith.constant 0 : index
    %c0_7 = arith.constant 0 : index
    %6 = vector.load %arg4[%c0_5, %c0_6, %c0_7] : memref<1x128x128xf32, #tpu.memory_space<vmem>>, vector<1x128x128xf32>
    %7 = vector.shape_cast %6 : vector<1x128x128xf32> to vector<128x128xf32>
    %cst_8 = arith.constant dense<0.000000e+00> : vector<8x128xf32>
    %8 = tpu.matmul %3, %5, %cst_8 {dimension_numbers = #tpu.dot_dimension_numbers<[1], [1], [0], [0], [0, 0, 1, 0], [], []>} : vector<8x32xf32>, vector<128x32xf32>, vector<8x128xf32> -> vector<8x128xf32>
    %9 = tpu.iota {dimensions = array<i32: 1>} : vector<8x128xi32>
    %c8_i32 = arith.constant 8 : i32
    %10 = vector.broadcast %c8_i32 : i32 to vector<8x128xi32>
    %11 = arith.cmpi slt, %9, %10 : vector<8x128xi32>
    %cst_9 = arith.constant -1.000000e+30 : f32
    %12 = vector.broadcast %cst_9 : f32 to vector<8x128xf32>
    %13 = arith.select %11, %8, %12 : vector<8x128xi1>, vector<8x128xf32>
    %cst_10 = arith.constant dense<0xFF800000> : vector<8xf32>
    %14 = vector.multi_reduction <maximumf>, %13, %cst_10 [1] : vector<8x128xf32> to vector<8xf32>
    %15 = vector.shape_cast %14 : vector<8xf32> to vector<8x1xf32>
    %16 = vector.broadcast %15 : vector<8x1xf32> to vector<8x128xf32>
    %17 = arith.subf %13, %16 : vector<8x128xf32>
    %18 = math.exp %17 : vector<8x128xf32>
    %cst_11 = arith.constant dense<0.000000e+00> : vector<8xf32>
    %19 = vector.multi_reduction <add>, %18, %cst_11 [1] : vector<8x128xf32> to vector<8xf32>
    %20 = vector.shape_cast %19 : vector<8xf32> to vector<8x1xf32>
    %21 = tpu.reciprocal %20 {approx = true} : vector<8x1xf32> -> vector<8x1xf32>
    %22 = vector.broadcast %21 : vector<8x1xf32> to vector<8x128xf32>
    %23 = arith.mulf %18, %22 : vector<8x128xf32>
    %24 = math.log %20 : vector<8x1xf32>
    %25 = vector.broadcast %24 : vector<8x1xf32> to vector<8x128xf32>
    %26 = arith.subf %17, %25 : vector<8x128xf32>
    %cst_12 = arith.constant dense<0.000000e+00> : vector<8x128xf32>
    %27 = tpu.matmul %23, %7, %cst_12 {dimension_numbers = #tpu.dot_dimension_numbers<[1], [0], [0], [1], [0, 0, 1, 1], [], []>} : vector<8x128xf32>, vector<128x128xf32>, vector<8x128xf32> -> vector<8x128xf32>
    %c0_13 = arith.constant 0 : index
    %c0_14 = arith.constant 0 : index
    %c0_15 = arith.constant 0 : index
    %28 = vector.load %arg5[%c0_13, %c0_14, %c0_15] : memref<1x8x128xf32, #tpu.memory_space<vmem>>, vector<1x8x128xf32>
    %29 = vector.shape_cast %28 : vector<1x8x128xf32> to vector<8x128xf32>
    %30 = vector.shape_cast %27 : vector<8x128xf32> to vector<1x8x128xf32>
    tpu.vector_store %arg5[%c0_13, %c0_14, %c0_15], %30 {strides = array<i32>} : memref<1x8x128xf32, #tpu.memory_space<vmem>>, vector<1x8x128xf32>,
    %c0_16 = arith.constant 0 : index
    %c0_17 = arith.constant 0 : index
    %c0_18 = arith.constant 0 : index
    %31 = vector.load %arg6[%c0_16, %c0_17, %c0_18] : memref<1x8x128xf32, #tpu.memory_space<vmem>>, vector<1x8x128xf32>
    %32 = vector.shape_cast %31 : vector<1x8x128xf32> to vector<8x128xf32>
    %33 = vector.shape_cast %23 : vector<8x128xf32> to vector<1x8x128xf32>
    tpu.vector_store %arg6[%c0_16, %c0_17, %c0_18], %33 {strides = array<i32>} : memref<1x8x128xf32, #tpu.memory_space<vmem>>, vector<1x8x128xf32>,
    %c0_19 = arith.constant 0 : index
    %c0_20 = arith.constant 0 : index
    %c0_21 = arith.constant 0 : index
    %34 = vector.load %arg7[%c0_19, %c0_20, %c0_21] : memref<1x8x128xf32, #tpu.memory_space<vmem>>, vector<1x8x128xf32>
    %35 = vector.shape_cast %34 : vector<1x8x128xf32> to vector<8x128xf32>
    %36 = vector.shape_cast %26 : vector<8x128xf32> to vector<1x8x128xf32>
    tpu.vector_store %arg7[%c0_19, %c0_20, %c0_21], %36 {strides = array<i32>} : memref<1x8x128xf32, #tpu.memory_space<vmem>>, vector<1x8x128xf32>,
    return
  }
  func.func @transform_0(%arg0: i32, %arg1: i32) -> (i32, i32, i32) {
    %c0_i32 = arith.constant 0 : i32
    %c0_i32_0 = arith.constant 0 : i32
    return %arg0, %arg1, %c0_i32 : i32, i32, i32
  }
  func.func @transform_1(%arg0: i32, %arg1: i32) -> (i32, i32, i32) {
    %c0_i32 = arith.constant 0 : i32
    %c0_i32_0 = arith.constant 0 : i32
    %c0_i32_1 = arith.constant 0 : i32
    return %arg0, %c0_i32, %c0_i32_0 : i32, i32, i32
  }
  func.func @transform_2(%arg0: i32, %arg1: i32) -> (i32, i32, i32) {
    %c0_i32 = arith.constant 0 : i32
    %c0_i32_0 = arith.constant 0 : i32
    %c0_i32_1 = arith.constant 0 : i32
    return %arg0, %c0_i32, %c0_i32_0 : i32, i32, i32
  }
  func.func @transform_3(%arg0: i32, %arg1: i32) -> (i32, i32, i32) {
    %c0_i32 = arith.constant 0 : i32
    %c0_i32_0 = arith.constant 0 : i32
    return %arg0, %arg1, %c0_i32 : i32, i32, i32
  }
  func.func @transform_4(%arg0: i32, %arg1: i32) -> (i32, i32, i32) {
    %c0_i32 = arith.constant 0 : i32
    %c0_i32_0 = arith.constant 0 : i32
    return %arg0, %arg1, %c0_i32 : i32, i32, i32
  }
  func.func @transform_5(%arg0: i32, %arg1: i32) -> (i32, i32, i32) {
    %c0_i32 = arith.constant 0 : i32
    %c0_i32_0 = arith.constant 0 : i32
    return %arg0, %arg1, %c0_i32 : i32, i32, i32
  }
}

</mosaic_0001>

<llo_original>
// kernel: tpu_custom_call.1
$region0: #{tpu_custom_call.1}
  #allocation0 [shape = 'u32[]', space=smem, size = 0x4, offset = 0x4, fixed_abs, tag = 'smem constant byte address 0x4 - core index']
  #allocation1 [shape = 'u32[144,128]{1,0:T(1,128)}', space=vmem, size = 0x12000, scoped, tag = 'internal scratch']
  %s0 = inlined_call_operand.hbm [shape: f32[2,8,32], index: 0, kind: input, shape index: {}]
  %s1 = inlined_call_operand.hbm [shape: f32[2,128,32], index: 1, kind: input, shape index: {}]
  %s2 = inlined_call_operand.hbm [shape: f32[2,128,128], index: 2, kind: input, shape index: {}]
  %s3 = inlined_call_operand.hbm [shape: f32[2,8,128], index: 3, kind: output, shape index: {0}]
  %s4 = inlined_call_operand.hbm [shape: f32[2,8,128], index: 4, kind: output, shape index: {1}]
  %s5 = inlined_call_operand.hbm [shape: f32[2,8,128], index: 5, kind: output, shape index: {2}]
  %6 = xla_tuple %s3, %s4, %s5
  %s7 = sld [smem:[#allocation0]]
  $region73: #{tpu_custom_call.1} parent=0
    _
  %s9 = ssub.s32 1, %s7
  %s10 = scalar_select 0, %s9, %s7
  $region1: #{tpu_custom_call.1} parent=0
    #allocation2 [shape = 'u8[8192]{0}', space=vmem, size = 0x2000, scoped, tag = 'input window, operand 0']
    #allocation3 [shape = 's32[2]{0}', space=sflag, size = 0x8, scoped, tag = 'scoped memory for tpu_custom_call.1']
    #allocation4 [shape = 's32[2]{0}', space=sflag, size = 0x8, scoped, tag = 'scoped memory for tpu_custom_call.1']
    #allocation5 [shape = 'u8[131072]{0}', space=vmem, size = 0x20000, scoped, tag = 'input window, operand 1']
    #allocation6 [shape = 's32[2]{0}', space=sflag, size = 0x8, scoped, tag = 'scoped memory for tpu_custom_call.1']
    #allocation7 [shape = 'u8[131072]{0}', space=vmem, size = 0x20000, scoped, tag = 'input window, operand 2']
    #allocation8 [shape = 'u8[8192]{0}', space=vmem, size = 0x2000, scoped, tag = 'output window, operand 0']
    #allocation9 [shape = 'u8[8192]{0}', space=vmem, size = 0x2000, scoped, tag = 'output window, operand 1']
    #allocation10 [shape = 's32[2]{0}', space=sflag, size = 0x8, scoped, tag = 'scoped memory for tpu_custom_call.1']
    #allocation11 [shape = 'u8[8192]{0}', space=vmem, size = 0x2000, scoped, tag = 'output window, operand 2']
    %11 = vsyncpa [#allocation3], 0
    %s12 = scalar_lea.sflag [#allocation3], 1
    %13 = vsyncpa %s12, 0
    %14 = vsyncpa [#allocation6], 0
    %s15 = scalar_lea.sflag [#allocation6], 1
    %16 = vsyncpa %s15, 0
    %17 = vsyncpa [#allocation4], 0
    %s18 = scalar_lea.sflag [#allocation4], 1
    %19 = vsyncpa %s18, 0
    %20 = vsyncpa [#allocation10], 0
    %s21 = scalar_lea.sflag [#allocation10], 1
    %22 = vsyncpa %s21, 0
    loop: start=0, step=1, limit=4
    $region2: #{tpu_custom_call.1} parent=1 // loop_pre_header
      _
    $region3: #{tpu_custom_call.1} parent=1 // loop_header
      %s24 = sphi 0, %s28
      %p25 = scmp.ge.s32.totalorder %s24, 4
      %s31 = sphi 0, %s43
      %s32 = sphi 0, %s39
      %s33 = sphi 0, %s31
      %s34 = sphi 0, %s32
      %s35 = sphi 0, %s33
      %s36 = sphi 0, %s34
      %s48 = sphi 0, %s50
      %s51 = sphi 0, %s48
      %s52 = sphi 0, %s51
      %s68 = sphi 0, %s52
      %s74 = sphi 0, %s76
      %s77 = sphi 0, %s74
      %s78 = sphi 0, %s77
      %s94 = sphi 0, %s78
      %s100 = sphi 0, %s102
      %s103 = sphi 0, %s100
      %s104 = sphi 0, %s103
      %s120 = sphi 0, %s104
      %s128 = sphi 0, %s130
      %s131 = sphi 0, %s128
      %s132 = sphi 0, %s131
      %s148 = sphi 0, %s132
      %s156 = sphi 0, %s158
      %s159 = sphi 0, %s156
      %s160 = sphi 0, %s159
      %s176 = sphi 0, %s160
      %s184 = sphi 0, %s186
      %s187 = sphi 0, %s184
      %s188 = sphi 0, %s187
      %s204 = sphi 0, %s188
    $region4: #{tpu_custom_call.1} parent=1 // loop_header_branch
      %27 = sbr.rel (%p25) target = $region8
    $region5: #{tpu_custom_call.1} parent=1 // loop_body
      %s29 = ssub.s32 %s24, 1
      %s30 = ssub.s32 %s24, 2
      %s37 = sadd.s32 1, %s32
      %p38 = scmp.ge.s32.totalorder %s37, 1
      %s39 = scalar_select %p38, 0, %s37
      %s40 = sadd.s32 1, %s31
      %s41 = scalar_select %p38, %s40, %s31
      %p42 = scmp.ge.s32.totalorder %s41, 2
      %s43 = scalar_select %p42, 0, %s41
      %s44 = ssub.s32 %s31, %s43
      %s45 = ssub.s32 %s32, %s39
      %s46 = sor.u32 %s44, %s45
      %p47 = scmp.eq.s32.totalorder %s46, 0
      %s49 = sadd.s32 %s48, 1
      %s50 = scalar_select %p47, %s48, %s49
      %p53 = pneg %p47
      %p54 = scmp.eq.s32.totalorder %s24, 1
      %p55 = por %p53, %p54
      %p56 = scmp.ne.s32.totalorder %s48, %s51
      %p57 = scmp.eq.s32.totalorder %s24, 0
      %p58 = por %p56, %p57
      %p59 = scmp.ne.s32.totalorder %s48, %s51
      %p60 = scmp.eq.s32.totalorder %s29, 1
      %p61 = por %p59, %p60
      %p62 = scmp.ne.s32.totalorder %s51, %s52
      %p63 = scmp.eq.s32.totalorder %s29, 0
      %p64 = por %p62, %p63
      %p65 = scmp.ne.s32.totalorder %s51, %s52
      %p66 = scmp.eq.s32.totalorder %s30, 1
      %p67 = por %p65, %p66
      %p69 = scmp.ne.s32.totalorder %s52, %s68
      %p70 = scmp.eq.s32.totalorder %s30, 0
      %p71 = por %p69, %p70
      %s72 = ssub.s32 %s31, %s43
      %p73 = scmp.eq.s32.totalorder %s72, 0
      %s75 = sadd.s32 %s74, 1
      %s76 = scalar_select %p73, %s74, %s75
      %p79 = pneg %p73
      %p80 = scmp.eq.s32.totalorder %s24, 1
      %p81 = por %p79, %p80
      %p82 = scmp.ne.s32.totalorder %s74, %s77
      %p83 = scmp.eq.s32.totalorder %s24, 0
      %p84 = por %p82, %p83
      %p85 = scmp.ne.s32.totalorder %s74, %s77
      %p86 = scmp.eq.s32.totalorder %s29, 1
      %p87 = por %p85, %p86
      %p88 = scmp.ne.s32.totalorder %s77, %s78
      %p89 = scmp.eq.s32.totalorder %s29, 0
      %p90 = por %p88, %p89
      %p91 = scmp.ne.s32.totalorder %s77, %s78
      %p92 = scmp.eq.s32.totalorder %s30, 1
      %p93 = por %p91, %p92
      %p95 = scmp.ne.s32.totalorder %s78, %s94
      %p96 = scmp.eq.s32.totalorder %s30, 0
      %p97 = por %p95, %p96
      %s98 = ssub.s32 %s31, %s43
      %p99 = scmp.eq.s32.totalorder %s98, 0
      %s101 = sadd.s32 %s100, 1
      %s102 = scalar_select %p99, %s100, %s101
      %p105 = pneg %p99
      %p106 = scmp.eq.s32.totalorder %s24, 1
      %p107 = por %p105, %p106
      %p108 = scmp.ne.s32.totalorder %s100, %s103
      %p109 = scmp.eq.s32.totalorder %s24, 0
      %p110 = por %p108, %p109
      %p111 = scmp.ne.s32.totalorder %s100, %s103
      %p112 = scmp.eq.s32.totalorder %s29, 1
      %p113 = por %p111, %p112
      %p114 = scmp.ne.s32.totalorder %s103, %s104
      %p115 = scmp.eq.s32.totalorder %s29, 0
      %p116 = por %p114, %p115
      %p117 = scmp.ne.s32.totalorder %s103, %s104
      %p118 = scmp.eq.s32.totalorder %s30, 1
      %p119 = por %p117, %p118
      %p121 = scmp.ne.s32.totalorder %s104, %s120
      %p122 = scmp.eq.s32.totalorder %s30, 0
      %p123 = por %p121, %p122
      %s124 = ssub.s32 %s31, %s43
      %s125 = ssub.s32 %s32, %s39
      %s126 = sor.u32 %s124, %s125
      %p127 = scmp.eq.s32.totalorder %s126, 0
      %s129 = sadd.s32 %s128, 1
      %s130 = scalar_select %p127, %s128, %s129
      %p133 = pneg %p127
      %p134 = scmp.eq.s32.totalorder %s24, 1
      %p135 = por %p133, %p134
      %p136 = scmp.ne.s32.totalorder %s128, %s131
      %p137 = scmp.eq.s32.totalorder %s24, 0
      %p138 = por %p136, %p137
      %p139 = scmp.ne.s32.totalorder %s128, %s131
      %p140 = scmp.eq.s32.totalorder %s29, 1
      %p141 = por %p139, %p140
      %p142 = scmp.ne.s32.totalorder %s131, %s132
      %p143 = scmp.eq.s32.totalorder %s29, 0
      %p144 = por %p142, %p143
      %p145 = scmp.ne.s32.totalorder %s131, %s132
      %p146 = scmp.eq.s32.totalorder %s30, 1
      %p147 = por %p145, %p146
      %p149 = scmp.ne.s32.totalorder %s132, %s148
      %p150 = scmp.eq.s32.totalorder %s30, 0
      %p151 = por %p149, %p150
      %s152 = ssub.s32 %s31, %s43
      %s153 = ssub.s32 %s32, %s39
      %s154 = sor.u32 %s152, %s153
      %p155 = scmp.eq.s32.totalorder %s154, 0
      %s157 = sadd.s32 %s156, 1
      %s158 = scalar_select %p155, %s156, %s157
      %p161 = pneg %p155
      %p162 = scmp.eq.s32.totalorder %s24, 1
      %p163 = por %p161, %p162
      %p164 = scmp.ne.s32.totalorder %s156, %s159
      %p165 = scmp.eq.s32.totalorder %s24, 0
      %p166 = por %p164, %p165
      %p167 = scmp.ne.s32.totalorder %s156, %s159
      %p168 = scmp.eq.s32.totalorder %s29, 1
      %p169 = por %p167, %p168
      %p170 = scmp.ne.s32.totalorder %s159, %s160
      %p171 = scmp.eq.s32.totalorder %s29, 0
      %p172 = por %p170, %p171
      %p173 = scmp.ne.s32.totalorder %s159, %s160
      %p174 = scmp.eq.s32.totalorder %s30, 1
      %p175 = por %p173, %p174
      %p177 = scmp.ne.s32.totalorder %s160, %s176
      %p178 = scmp.eq.s32.totalorder %s30, 0
      %p179 = por %p177, %p178
      %s180 = ssub.s32 %s31, %s43
      %s181 = ssub.s32 %s32, %s39
      %s182 = sor.u32 %s180, %s181
      %p183 = scmp.eq.s32.totalorder %s182, 0
      %s185 = sadd.s32 %s184, 1
      %s186 = scalar_select %p183, %s184, %s185
      %p189 = pneg %p183
      %p190 = scmp.eq.s32.totalorder %s24, 1
      %p191 = por %p189, %p190
      %p192 = scmp.ne.s32.totalorder %s184, %s187
      %p193 = scmp.eq.s32.totalorder %s24, 0
      %p194 = por %p192, %p193
      %p195 = scmp.ne.s32.totalorder %s184, %s187
      %p196 = scmp.eq.s32.totalorder %s29, 1
      %p197 = por %p195, %p196
      %p198 = scmp.ne.s32.totalorder %s187, %s188
      %p199 = scmp.eq.s32.totalorder %s29, 0
      %p200 = por %p198, %p199
      %p201 = scmp.ne.s32.totalorder %s187, %s188
      %p202 = scmp.eq.s32.totalorder %s30, 1
      %p203 = por %p201, %p202
      %p205 = scmp.ne.s32.totalorder %s188, %s204
      %p206 = scmp.eq.s32.totalorder %s30, 0
      %p207 = por %p205, %p206
      %p208 = scmp.le.s32.totalorder 1, %s24
      %p209 = scmp.lt.s32.totalorder %s24, 3
      %p210 = pnand %p208, %p209
      %p211 = pneg %p210
      // Predicated region
      $region9: #{tpu_custom_call.1} parent=5 // pred_check
        _
      $region10: #{tpu_custom_call.1} parent=5 // pred_check_branch
        %213 = sbr.rel (%p210) target = $region12
      $region11: #{tpu_custom_call.1} parent=5 // pred_region
        %s214 = ssub.s32 %s24, 1
      $region12: #{tpu_custom_call.1} parent=5 // pred_fallthru
        _
      %p215 = scmp.lt.s32.totalorder %s24, 2
      // Predicated region
      $region13: #{tpu_custom_call.1} parent=5 // pred_check
        %p216 = pneg %p215
      $region14: #{tpu_custom_call.1} parent=5 // pred_check_branch
        %218 = sbr.rel (%p216) target = $region16
      $region15: #{tpu_custom_call.1} parent=5 // pred_region
        // Predicated region
        $region17: #{tpu_custom_call.1} parent=15 // pred_check
          %p219 = pneg %p58
        $region18: #{tpu_custom_call.1} parent=15 // pred_check_branch
          %221 = sbr.rel (%p219) target = $region20
        $region19: #{tpu_custom_call.1} parent=15 // pred_region
          %s222 = sand.u32 %s48, 1
          %s223 = scalar_lea.sflag [#allocation3], %s222
          %s224 = sand.u32 %s48, 1
          %s225 = smul.addr %s224, 8
          %s226 = scalar_lea.vmem [#allocation2], %s225
          %s228 = ssub.s32 128, 128
          %229 = vsyncadd %s223, %s228
          %s230 = sadd.s32 %s32, %s31
          %s231 = smul.addr %s230, 128
          %s232 = scalar_lea.hbm %s0, %s231
          %s234 = sshll.u32 %s226, 4
          %s235 = int_to_ptr.vmem [resolvable:$true] %s234
          %237 = dma.hbm_to_vmem [thread:$0]  %s232, 128, %s235, %s223
        $region20: #{tpu_custom_call.1} parent=15 // pred_fallthru
          _
        // Predicated region
        $region21: #{tpu_custom_call.1} parent=15 // pred_check
          %p238 = pneg %p84
        $region22: #{tpu_custom_call.1} parent=15 // pred_check_branch
          %240 = sbr.rel (%p238) target = $region24
        $region23: #{tpu_custom_call.1} parent=15 // pred_region
          %s241 = sand.u32 %s24, 1
          %s242 = scalar_lea.sflag [#allocation6], %s241
          %s243 = sand.u32 %s74, 1
          %s244 = smul.addr %s243, 128
          %s245 = scalar_lea.vmem [#allocation5], %s244
          %s247 = ssub.s32 2048, 2048
          %248 = vsyncadd %s242, %s247
          %s249 = smul.addr %s31, 16
          %s250 = smul.addr %s249, 128
          %s251 = scalar_lea.hbm %s1, %s250
          %s252 = sshll.u32 %s245, 4
          %s253 = int_to_ptr.vmem [resolvable:$true] %s252
          %258 = dma.hbm_to_vmem [thread:$0]  %s251, 2048, %s253, %s242, 128, 128, 8
        $region24: #{tpu_custom_call.1} parent=15 // pred_fallthru
          _
        // Predicated region
        $region25: #{tpu_custom_call.1} parent=15 // pred_check
          %p259 = pneg %p110
        $region26: #{tpu_custom_call.1} parent=15 // pred_check_branch
          %261 = sbr.rel (%p259) target = $region28
        $region27: #{tpu_custom_call.1} parent=15 // pred_region
          %s262 = sand.u32 %s24, 1
          %s263 = scalar_lea.sflag [#allocation6], %s262
          %s264 = sand.u32 %s100, 1
          %s265 = smul.addr %s264, 128
          %s266 = scalar_lea.vmem [#allocation7], %s265
          %s268 = ssub.s32 2048, 2048
          %269 = vsyncadd %s263, %s268
          %s270 = smul.addr %s31, 16
          %s271 = smul.addr %s270, 128
          %s272 = scalar_lea.hbm %s2, %s271
          %s273 = sshll.u32 %s266, 4
          %s274 = int_to_ptr.vmem [resolvable:$true] %s273
          %279 = dma.hbm_to_vmem [thread:$0]  %s272, 2048, %s274, %s263, 128, 128, 8
        $region28: #{tpu_custom_call.1} parent=15 // pred_fallthru
          _
      $region16: #{tpu_custom_call.1} parent=5 // pred_fallthru
        _
      %p280 = scmp.le.s32.totalorder 1, %s24
      %p281 = scmp.lt.s32.totalorder %s24, 3
      %p282 = pnand %p280, %p281
      %p283 = pneg %p282
      // Predicated region
      $region29: #{tpu_custom_call.1} parent=5 // pred_check
        _
      $region30: #{tpu_custom_call.1} parent=5 // pred_check_branch
        %285 = sbr.rel (%p282) target = $region32
      $region31: #{tpu_custom_call.1} parent=5 // pred_region
        %s286 = ssub.s32 %s24, 1
        %s287 = sand.u32 %s51, 1
        %s288 = scalar_lea.sflag [#allocation3], %s287
        %s289 = sand.u32 %s51, 1
        %s290 = smul.addr %s289, 8
        %s291 = scalar_lea.vmem [#allocation2], %s290
        // Predicated region
        $region33: #{tpu_custom_call.1} parent=31 // pred_check
          %p292 = pneg %p64
        $region34: #{tpu_custom_call.1} parent=31 // pred_check_branch
          %294 = sbr.rel (%p292) target = $region36
        $region35: #{tpu_custom_call.1} parent=31 // pred_region
          %295 = dma.done %s288, 128
        $region36: #{tpu_custom_call.1} parent=31 // pred_fallthru
          _
        %s296 = sand.u32 %s29, 1
        %s297 = scalar_lea.sflag [#allocation6], %s296
        %s298 = sand.u32 %s77, 1
        %s299 = smul.addr %s298, 128
        %s300 = scalar_lea.vmem [#allocation5], %s299
        // Predicated region
        $region37: #{tpu_custom_call.1} parent=31 // pred_check
          %p301 = pneg %p90
        $region38: #{tpu_custom_call.1} parent=31 // pred_check_branch
          %303 = sbr.rel (%p301) target = $region40
        $region39: #{tpu_custom_call.1} parent=31 // pred_region
          %304 = dma.done %s297, 2048
        $region40: #{tpu_custom_call.1} parent=31 // pred_fallthru
          _
        %s305 = sand.u32 %s29, 1
        %s306 = scalar_lea.sflag [#allocation6], %s305
        %s307 = sand.u32 %s103, 1
        %s308 = smul.addr %s307, 128
        %s309 = scalar_lea.vmem [#allocation7], %s308
        // Predicated region
        $region41: #{tpu_custom_call.1} parent=31 // pred_check
          %p310 = pneg %p116
        $region42: #{tpu_custom_call.1} parent=31 // pred_check_branch
          %312 = sbr.rel (%p310) target = $region44
        $region43: #{tpu_custom_call.1} parent=31 // pred_region
          %313 = dma.done %s306, 2048
        $region44: #{tpu_custom_call.1} parent=31 // pred_fallthru
          _
        %s314 = sand.u32 %s51, 1
        %s315 = scalar_lea.sflag [#allocation3], %s314
        %s316 = sand.u32 %s51, 1
        %s317 = smul.addr %s316, 8
        %s318 = scalar_lea.vmem [#allocation2], %s317
        %p319 = pneg %p64
        %p320 = pneg %p61
        %s321 = sand.u32 %s29, 1
        %s322 = scalar_lea.sflag [#allocation6], %s321
        %s323 = sand.u32 %s77, 1
        %s324 = smul.addr %s323, 128
        %s325 = scalar_lea.vmem [#allocation5], %s324
        %p326 = pneg %p90
        %p327 = pneg %p87
        %s328 = sand.u32 %s29, 1
        %s329 = scalar_lea.sflag [#allocation6], %s328
        %s330 = sand.u32 %s103, 1
        %s331 = smul.addr %s330, 128
        %s332 = scalar_lea.vmem [#allocation7], %s331
        %p333 = pneg %p116
        %p334 = pneg %p113
        %p335 = pneg %p144
        %p336 = pneg %p141
        %s337 = sand.u32 %s131, 1
        %s338 = scalar_lea.sflag [#allocation4], %s337
        %s339 = sand.u32 %s131, 1
        %s340 = smul.addr %s339, 8
        %s341 = scalar_lea.vmem [#allocation8], %s340
        %p342 = pneg %p172
        %p343 = pneg %p169
        %s344 = sand.u32 %s29, 1
        %s345 = scalar_lea.sflag [#allocation10], %s344
        %s346 = sand.u32 %s159, 1
        %s347 = smul.addr %s346, 8
        %s348 = scalar_lea.vmem [#allocation9], %s347
        %p349 = pneg %p200
        %p350 = pneg %p197
        %s351 = sand.u32 %s29, 1
        %s352 = scalar_lea.sflag [#allocation10], %s351
        %s353 = sand.u32 %s187, 1
        %s354 = smul.addr %s353, 8
        %s355 = scalar_lea.vmem [#allocation11], %s354
        %v356 = vld [vmem:[%s291] sm:$0xff]
        %v357 = vmul.f32 %v356, 0.17677669
        %v358 = vld [vmem:[%s300] sm:$0xff]
        %v359 = vld [vmem:[%s300 + $0x8] sm:$0xff]
        %v360 = vld [vmem:[%s300 + $0x10] sm:$0xff]
        %v361 = vld [vmem:[%s300 + $0x18] sm:$0xff]
        %v362 = vld [vmem:[%s300 + $0x20] sm:$0xff]
        %v363 = vld [vmem:[%s300 + $0x28] sm:$0xff]
        %v364 = vld [vmem:[%s300 + $0x30] sm:$0xff]
        %v365 = vld [vmem:[%s300 + $0x38] sm:$0xff]
        %v366 = vld [vmem:[%s300 + $0x40] sm:$0xff]
        %v367 = vld [vmem:[%s300 + $0x48] sm:$0xff]
        %v368 = vld [vmem:[%s300 + $0x50] sm:$0xff]
        %v369 = vld [vmem:[%s300 + $0x58] sm:$0xff]
        %v370 = vld [vmem:[%s300 + $0x60] sm:$0xff]
        %v371 = vld [vmem:[%s300 + $0x68] sm:$0xff]
        %v372 = vld [vmem:[%s300 + $0x70] sm:$0xff]
        %v373 = vld [vmem:[%s300 + $0x78] sm:$0xff]
        %v374 = vld [vmem:[%s309] sm:$0xff]
        %v375 = vld [vmem:[%s309 + $0x8] sm:$0xff]
        %v376 = vld [vmem:[%s309 + $0x10] sm:$0xff]
        %v377 = vld [vmem:[%s309 + $0x18] sm:$0xff]
        %v378 = vld [vmem:[%s309 + $0x20] sm:$0xff]
        %v379 = vld [vmem:[%s309 + $0x28] sm:$0xff]
        %v380 = vld [vmem:[%s309 + $0x30] sm:$0xff]
        %v381 = vld [vmem:[%s309 + $0x38] sm:$0xff]
        %v382 = vld [vmem:[%s309 + $0x40] sm:$0xff]
        %v383 = vld [vmem:[%s309 + $0x48] sm:$0xff]
        %v384 = vld [vmem:[%s309 + $0x50] sm:$0xff]
        %v385 = vld [vmem:[%s309 + $0x58] sm:$0xff]
        %v386 = vld [vmem:[%s309 + $0x60] sm:$0xff]
        %v387 = vld [vmem:[%s309 + $0x68] sm:$0xff]
        %v388 = vld [vmem:[%s309 + $0x70] sm:$0xff]
        %v389 = vld [vmem:[%s309 + $0x78] sm:$0xff]
        %vm390 = vcmask 261120
        %v392 = vsel %vm390, %v357, 0
        %v395 = vsel %vm390, %v358, 0
        %v398 = vsel %vm390, %v359, 0
        %v401 = vsel %vm390, %v360, 0
        %v404 = vsel %vm390, %v361, 0
        %v407 = vsel %vm390, %v362, 0
        %v410 = vsel %vm390, %v363, 0
        %v413 = vsel %vm390, %v364, 0
        %v416 = vsel %vm390, %v365, 0
        %v419 = vsel %vm390, %v366, 0
        %v422 = vsel %vm390, %v367, 0
        %v425 = vsel %vm390, %v368, 0
        %v428 = vsel %vm390, %v369, 0
        %v431 = vsel %vm390, %v370, 0
        %v434 = vsel %vm390, %v371, 0
        %v437 = vsel %vm390, %v372, 0
        %v440 = vsel %vm390, %v373, 0
        %442 = vmatprep.subr.mxu0 0.0
        %443 = vmatpush1.xpose.msra.mxu0 %v395
        %444 = vmatprep.subr.mxu0 0.0
        %445 = vmatpush1.xpose.msra.mxu0 %v398
        %446 = vmatprep.subr.mxu0 0.0
        %447 = vmatpush1.xpose.msra.mxu0 %v401
        %448 = vmatprep.subr.mxu0 0.0
        %449 = vmatpush1.xpose.msra.mxu0 %v404
        %450 = vmatprep.subr.mxu0 0.0
        %451 = vmatpush1.xpose.msra.mxu0 %v407
        %452 = vmatprep.subr.mxu0 0.0
        %453 = vmatpush1.xpose.msra.mxu0 %v410
        %454 = vmatprep.subr.mxu0 0.0
        %455 = vmatpush1.xpose.msra.mxu0 %v413
        %456 = vmatprep.subr.mxu0 0.0
        %457 = vmatpush1.xpose.msra.mxu0 %v416
        %458 = vmatprep.subr.mxu0 0.0
        %459 = vmatpush1.xpose.msra.mxu0 %v419
        %460 = vmatprep.subr.mxu0 0.0
        %461 = vmatpush1.xpose.msra.mxu0 %v422
        %462 = vmatprep.subr.mxu0 0.0
        %463 = vmatpush1.xpose.msra.mxu0 %v425
        %464 = vmatprep.subr.mxu0 0.0
        %465 = vmatpush1.xpose.msra.mxu0 %v428
        %466 = vmatprep.subr.mxu0 0.0
        %467 = vmatpush1.xpose.msra.mxu0 %v431
        %468 = vmatprep.subr.mxu0 0.0
        %469 = vmatpush1.xpose.msra.mxu0 %v434
        %470 = vmatprep.subr.mxu0 0.0
        %471 = vmatpush1.xpose.msra.mxu0 %v437
        %472 = vmatprep.subr.mxu0 0.0
        %473 = vmatpush1.xpose.msra.mxu0 %v440
        %474 = vmatprep.subr.mxu0 0.0
        %475 = vmatpush1.xpose.msra.mxu0 0.0
        %476 = vmatprep.subr.mxu0 0.0
        %477 = vmatpush1.xpose.msra.mxu0 0.0
        %478 = vmatprep.subr.mxu0 0.0
        %479 = vmatpush1.xpose.msra.mxu0 0.0
        %480 = vmatprep.subr.mxu0 0.0
        %481 = vmatpush1.xpose.msra.mxu0 0.0
        %482 = vmatprep.subr.mxu0 0.0
        %483 = vmatpush1.xpose.msra.mxu0 0.0
        %484 = vmatprep.subr.mxu0 0.0
        %485 = vmatpush1.xpose.msra.mxu0 0.0
        %486 = vmatprep.subr.mxu0 0.0
        %487 = vmatpush1.xpose.msra.mxu0 0.0
        %488 = vmatprep.subr.mxu0 0.0
        %489 = vmatpush1.xpose.msra.mxu0 0.0
        %490 = vmatprep.subr.mxu0 0.0
        %491 = vmatpush1.xpose.msra.mxu0 0.0
        %492 = vmatprep.subr.mxu0 0.0
        %493 = vmatpush1.xpose.msra.mxu0 0.0
        %494 = vmatprep.subr.mxu0 0.0
        %495 = vmatpush1.xpose.msra.mxu0 0.0
        %496 = vmatprep.subr.mxu0 0.0
        %497 = vmatpush1.xpose.msra.mxu0 0.0
        %498 = vmatprep.subr.mxu0 0.0
        %499 = vmatpush1.xpose.msra.mxu0 0.0
        %500 = vmatprep.subr.mxu0 0.0
        %501 = vmatpush1.xpose.msra.mxu0 0.0
        %502 = vmatprep.subr.mxu0 0.0
        %503 = vmatpush1.xpose.msra.mxu0 0.0
        %504 = vmatprep.subr.mxu0 0.0
        %505 = vmatpush1.xpose.msra.mxu0 0.0
        %506 = vmatprep.mubr.f32.mxu0 0.0
        %507 = vmatmul.mubr.f32.gmra.mrb[0].mxu0 %v392
        %v508 = vpop.f32.mrb[0].mxu0
        %v509 = vadd.f32 0.0, %v508
        %v510 = vpop.f32.mrb[0].mxu0
        %511 = vdwg.mxu0
        %v512 = vlaneseq
        %v513 = vand.u32 %v512, 127
        %vm514 = vcmp.lt.s32.totalorder %v513, 8
        %v515 = vsel %vm514, %v509, -1e+30
        %516 = vmax.xlane.f32.xlu0 %v515
        %v517 = vpop.xlane.xlu0 %516
        %v518 = vsub.f32 %v515, %v517
        %v519 = vmul.f32 %v518, 1.442695
        %v520 = vpow.pop %v519
        %521 = vadd.xlane.f32.xlu0 %v520
        %v522 = vpop.xlane.xlu0 %521
        %v523 = vrcp.pop %v522
        %v524 = vmul.f32 %v520, %v523
        %v525 = vlog2.pop %v522
        %v526 = vmul.f32 %v525, 0.6931472
        %v527 = vsub.f32 %v518, %v526
        %528 = vmatprep.subr.mxu0 0.0
        %529 = vmatpush1.msra.mxu0 %v374
        %530 = vmatprep.subr.mxu0 0.0
        %531 = vmatpush1.msra.mxu0 %v375
        %532 = vmatprep.subr.mxu0 0.0
        %533 = vmatpush1.msra.mxu0 %v376
        %534 = vmatprep.subr.mxu0 0.0
        %535 = vmatpush1.msra.mxu0 %v377
        %536 = vmatprep.subr.mxu0 0.0
        %537 = vmatpush1.msra.mxu0 %v378
        %538 = vmatprep.subr.mxu0 0.0
        %539 = vmatpush1.msra.mxu0 %v379
        %540 = vmatprep.subr.mxu0 0.0
        %541 = vmatpush1.msra.mxu0 %v380
        %542 = vmatprep.subr.mxu0 0.0
        %543 = vmatpush1.msra.mxu0 %v381
        %544 = vmatprep.subr.mxu0 0.0
        %545 = vmatpush1.msra.mxu0 %v382
        %546 = vmatprep.subr.mxu0 0.0
        %547 = vmatpush1.msra.mxu0 %v383
        %548 = vmatprep.subr.mxu0 0.0
        %549 = vmatpush1.msra.mxu0 %v384
        %550 = vmatprep.subr.mxu0 0.0
        %551 = vmatpush1.msra.mxu0 %v385
        %552 = vmatprep.subr.mxu0 0.0
        %553 = vmatpush1.msra.mxu0 %v386
        %554 = vmatprep.subr.mxu0 0.0
        %555 = vmatpush1.msra.mxu0 %v387
        %556 = vmatprep.subr.mxu0 0.0
        %557 = vmatpush1.msra.mxu0 %v388
        %558 = vmatprep.subr.mxu0 0.0
        %559 = vmatpush1.msra.mxu0 %v389
        %560 = vmatprep.subr.mxu0 0.0
        %561 = vmatpush1.msra.mxu0 0.0
        %562 = vmatprep.subr.mxu0 0.0
        %563 = vmatpush1.msra.mxu0 0.0
        %564 = vmatprep.subr.mxu0 0.0
        %565 = vmatpush1.msra.mxu0 0.0
        %566 = vmatprep.subr.mxu0 0.0
        %567 = vmatpush1.msra.mxu0 0.0
        %568 = vmatprep.subr.mxu0 0.0
        %569 = vmatpush1.msra.mxu0 0.0
        %570 = vmatprep.subr.mxu0 0.0
        %571 = vmatpush1.msra.mxu0 0.0
        %572 = vmatprep.subr.mxu0 0.0
        %573 = vmatpush1.msra.mxu0 0.0
        %574 = vmatprep.subr.mxu0 0.0
        %575 = vmatpush1.msra.mxu0 0.0
        %576 = vmatprep.subr.mxu0 0.0
        %577 = vmatpush1.msra.mxu0 0.0
        %578 = vmatprep.subr.mxu0 0.0
        %579 = vmatpush1.msra.mxu0 0.0
        %580 = vmatprep.subr.mxu0 0.0
        %581 = vmatpush1.msra.mxu0 0.0
        %582 = vmatprep.subr.mxu0 0.0
        %583 = vmatpush1.msra.mxu0 0.0
        %584 = vmatprep.subr.mxu0 0.0
        %585 = vmatpush1.msra.mxu0 0.0
        %586 = vmatprep.subr.mxu0 0.0
        %587 = vmatpush1.msra.mxu0 0.0
        %588 = vmatprep.subr.mxu0 0.0
        %589 = vmatpush1.msra.mxu0 0.0
        %590 = vmatprep.subr.mxu0 0.0
        %591 = vmatpush1.msra.mxu0 0.0
        %592 = vmatprep.mubr.f32.mxu0 0.0
        %593 = vmatmul.mubr.f32.gmra.mrb[0].mxu0 %v524
        %v594 = vpop.f32.mrb[0].mxu0
        %v595 = vadd.f32 0.0, %v594
        %v596 = vpop.f32.mrb[0].mxu0
        %597 = vdwg.mxu0
        %598 = vst [vmem:[%s341] sm:$0xff] %v595
        %599 = vst [vmem:[%s348] sm:$0xff] %v524
        %600 = vst [vmem:[%s355] sm:$0xff] %v527
        %s601 = sand.u32 %s131, 1
        %s602 = scalar_lea.sflag [#allocation4], %s601
        %s603 = sand.u32 %s131, 1
        %s604 = smul.addr %s603, 8
        %s605 = scalar_lea.vmem [#allocation8], %s604
        %s606 = sand.u32 %s29, 1
        %s607 = scalar_lea.sflag [#allocation10], %s606
        %s608 = sand.u32 %s159, 1
        %s609 = smul.addr %s608, 8
        %s610 = scalar_lea.vmem [#allocation9], %s609
        %s611 = sand.u32 %s29, 1
        %s612 = scalar_lea.sflag [#allocation10], %s611
        %s613 = sand.u32 %s187, 1
        %s614 = smul.addr %s613, 8
        %s615 = scalar_lea.vmem [#allocation11], %s614
        // Predicated region
        $region45: #{tpu_custom_call.1} parent=31 // pred_check
          %p616 = pneg %p141
        $region46: #{tpu_custom_call.1} parent=31 // pred_check_branch
          %618 = sbr.rel (%p616) target = $region48
        $region47: #{tpu_custom_call.1} parent=31 // pred_region
          %s620 = ssub.s32 128, 128
          %621 = vsyncadd %s602, %s620
          %s622 = sadd.s32 %s34, %s33
          %s623 = smul.addr %s622, 128
          %s624 = scalar_lea.hbm %s3, %s623
          %s626 = sshll.u32 %s605, 4
          %s627 = int_to_ptr.vmem [resolvable:$true] %s626
          %629 = dma.vmem_to_hbm [thread:$0]  %s627, 128, %s624, %s602
        $region48: #{tpu_custom_call.1} parent=31 // pred_fallthru
          _
        // Predicated region
        $region49: #{tpu_custom_call.1} parent=31 // pred_check
          %p630 = pneg %p169
        $region50: #{tpu_custom_call.1} parent=31 // pred_check_branch
          %632 = sbr.rel (%p630) target = $region52
        $region51: #{tpu_custom_call.1} parent=31 // pred_region
          %s634 = ssub.s32 128, 128
          %635 = vsyncadd %s607, %s634
          %s636 = sadd.s32 %s34, %s33
          %s637 = smul.addr %s636, 128
          %s638 = scalar_lea.hbm %s4, %s637
          %s640 = sshll.u32 %s610, 4
          %s641 = int_to_ptr.vmem [resolvable:$true] %s640
          %643 = dma.vmem_to_hbm [thread:$0]  %s641, 128, %s638, %s607
        $region52: #{tpu_custom_call.1} parent=31 // pred_fallthru
          _
        // Predicated region
        $region53: #{tpu_custom_call.1} parent=31 // pred_check
          %p644 = pneg %p197
        $region54: #{tpu_custom_call.1} parent=31 // pred_check_branch
          %646 = sbr.rel (%p644) target = $region56
        $region55: #{tpu_custom_call.1} parent=31 // pred_region
          %s648 = ssub.s32 128, 128
          %649 = vsyncadd %s612, %s648
          %s650 = sadd.s32 %s34, %s33
          %s651 = smul.addr %s650, 128
          %s652 = scalar_lea.hbm %s5, %s651
          %s654 = sshll.u32 %s615, 4
          %s655 = int_to_ptr.vmem [resolvable:$true] %s654
          %657 = dma.vmem_to_hbm [thread:$0]  %s655, 128, %s652, %s612
        $region56: #{tpu_custom_call.1} parent=31 // pred_fallthru
          _
      $region32: #{tpu_custom_call.1} parent=5 // pred_fallthru
        _
      %p658 = scmp.le.s32.totalorder 2, %s24
      // Predicated region
      $region57: #{tpu_custom_call.1} parent=5 // pred_check
        %p659 = pneg %p658
      $region58: #{tpu_custom_call.1} parent=5 // pred_check_branch
        %661 = sbr.rel (%p659) target = $region60
      $region59: #{tpu_custom_call.1} parent=5 // pred_region
        %s662 = ssub.s32 %s24, 2
        // Predicated region
        $region61: #{tpu_custom_call.1} parent=59 // pred_check
          %p663 = pneg %p147
        $region62: #{tpu_custom_call.1} parent=59 // pred_check_branch
          %665 = sbr.rel (%p663) target = $region64
        $region63: #{tpu_custom_call.1} parent=59 // pred_region
          %s666 = sand.u32 %s132, 1
          %s667 = scalar_lea.sflag [#allocation4], %s666
          %s668 = sand.u32 %s132, 1
          %s669 = smul.addr %s668, 8
          %s670 = scalar_lea.vmem [#allocation8], %s669
          %671 = dma.done %s667, 128
        $region64: #{tpu_custom_call.1} parent=59 // pred_fallthru
          _
        // Predicated region
        $region65: #{tpu_custom_call.1} parent=59 // pred_check
          %p672 = pneg %p175
        $region66: #{tpu_custom_call.1} parent=59 // pred_check_branch
          %674 = sbr.rel (%p672) target = $region68
        $region67: #{tpu_custom_call.1} parent=59 // pred_region
          %s675 = sand.u32 %s30, 1
          %s676 = scalar_lea.sflag [#allocation10], %s675
          %s677 = sand.u32 %s160, 1
          %s678 = smul.addr %s677, 8
          %s679 = scalar_lea.vmem [#allocation9], %s678
          %680 = dma.done %s676, 128
        $region68: #{tpu_custom_call.1} parent=59 // pred_fallthru
          _
        // Predicated region
        $region69: #{tpu_custom_call.1} parent=59 // pred_check
          %p681 = pneg %p203
        $region70: #{tpu_custom_call.1} parent=59 // pred_check_branch
          %683 = sbr.rel (%p681) target = $region72
        $region71: #{tpu_custom_call.1} parent=59 // pred_region
          %s684 = sand.u32 %s30, 1
          %s685 = scalar_lea.sflag [#allocation10], %s684
          %s686 = sand.u32 %s188, 1
          %s687 = smul.addr %s686, 8
          %s688 = scalar_lea.vmem [#allocation11], %s687
          %689 = dma.done %s685, 128
        $region72: #{tpu_custom_call.1} parent=59 // pred_fallthru
          _
      $region60: #{tpu_custom_call.1} parent=5 // pred_fallthru
        _
    $region6: #{tpu_custom_call.1} parent=1 // loop_footer
      %s28 = sadd.s32 1, %s24
    $region7: #{tpu_custom_call.1} parent=1 // loop_footer_branch
      %23 = sbr.rel target = $region3
    $region8: #{tpu_custom_call.1} parent=1 // loop_exit
      _
    %690 = vsyncpa [#allocation3], 1
    %s691 = scalar_lea.sflag [#allocation3], 1
    %692 = vsyncpa %s691, 1
    %693 = vsyncpa [#allocation6], 1
    %s694 = scalar_lea.sflag [#allocation6], 1
    %695 = vsyncpa %s694, 1
    %696 = vsyncpa [#allocation4], 1
    %s697 = scalar_lea.sflag [#allocation4], 1
    %698 = vsyncpa %s697, 1
    %699 = vsyncpa [#allocation10], 1
    %s700 = scalar_lea.sflag [#allocation10], 1
    %701 = vsyncpa %s700, 1

</llo_original>
